<compile_context>
chip_gen: v6e
topology: v6e:2x2x1
jax: 0.10.0
libtpu: 0.0.40
codegen_flags: <defaults>
</compile_context>

<pallas_src>
import jax
import jax.numpy as jnp
from jax import lax
from jax.experimental import pallas as pl
from jax.experimental.pallas import tpu as pltpu

_EPS = 1e-8
_EPS2 = _EPS * _EPS  # 1e-16, representable in f32
_LANE = 128


def _cdiv(a, b):
    return (a + b - 1) // b


def _round_up(x, m):
    return _cdiv(x, m) * m


def _tpu_generation():
    try:
        kind = jax.devices()[0].device_kind.lower()
    except Exception:
        return None
    for g in (7, 6, 5, 4, 3):
        if f"v{g}" in kind:
            return g
    return None


def _hw_params():
    gen = _tpu_generation()
    if gen == 7:
        # v7x: 64 MiB VMEM/TC, 2 TensorCores per chip, 3.2 TB/s HBM.
        return dict(splits=2, vmem_limit=48 * 1024 * 1024,
                    block_target=6 * 1024 * 1024)
    if gen in (5, 6):
        # v5e / v6e: 128 MiB VMEM, single TensorCore.
        return dict(splits=1, vmem_limit=96 * 1024 * 1024,
                    block_target=8 * 1024 * 1024)
    # Unknown / older chips: conservative, fits the default scoped-VMEM limit.
    return dict(splits=1, vmem_limit=None, block_target=2 * 1024 * 1024)


def _make_kernel(n_t, tile, hw_real):
    def kernel(y1_ref, y2_ref, o_ref, acc_ref):
        t = pl.program_id(2)

        # Reset the per-(split, batch-block) accumulator at sweep start.
        @pl.when(t == 0)
        def _():
            acc_ref[...] = jnp.zeros_like(acc_ref)

        y1 = y1_ref[...]  # (b_blk, C, tile), native dtype
        y2 = y2_ref[...]

        # Products in the native dtype (bf16 stays on the bf16 VALU on
        # v6e/v7x); the channel reduction accumulates in f32.
        w12 = jnp.sum((y1 * y2).astype(jnp.float32), axis=1)  # (b_blk, tile)
        w1 = jnp.sum((y1 * y1).astype(jnp.float32), axis=1)
        w2 = jnp.sum((y2 * y2).astype(jnp.float32), axis=1)

        # torch clamps each norm separately: max(sqrt(w), eps) == sqrt(max(w, eps^2)).
        # Two rsqrts (EUP slot -> effectively free) avoid overflow of w1*w2.
        inv1 = lax.rsqrt(jnp.maximum(w1, _EPS2))
        inv2 = lax.rsqrt(jnp.maximum(w2, _EPS2))
        cos = w12 * inv1 * inv2

        # In-kernel ragged-tail / duplicate-block mask (no wrapper-side pad):
        # zero every lane whose global spatial index >= number of real pixels.
        offset = (pl.program_id(0) * n_t + t) * tile
        col = lax.broadcasted_iota(jnp.int32, cos.shape, dimension=1)
        cos = jnp.where(col + offset < hw_real, cos, 0.0)

        # Lane-dense accumulation (pure VPU); reduction deferred to epilogue.
        acc_ref[...] += cos

        @pl.when(t == n_t - 1)
        def _():
            s = jnp.sum(acc_ref[...], axis=(0, 1), keepdims=True)  # (1, 1)
            o_ref[...] = s.reshape(1, 1, 1)

    return kernel


def feature_orthogonal_loss(y1, y2):
    """Pallas TPU implementation of FeatureOrthogonalLoss.forward.

    Args:
      y1, y2: NCHW arrays of identical shape (B, C, H, W).  bf16 inputs are
        processed in bf16 (halves HBM traffic); accumulation is f32.

    Returns:
      scalar float32 loss.
    """
    assert y1.shape == y2.shape, "y1 and y2 must have the same shape"
    B, C, H, W = y1.shape
    HW = H * W
    dtype_bytes = jnp.dtype(y1.dtype).itemsize
    sub_pack = 8 * (4 // dtype_bytes)          # sublane packing: f32=8, bf16=16, i8=32
    c_pad = _round_up(C, sub_pack)             # real sublane footprint of the C axis
    # NOTE: for C << sub_pack (e.g. 3-4 channels) vregs are partially empty;
    # the kernel is still correct, just not VPU-optimal for tiny C.

    # --- reshape (free); pad only when HW < one lane width -----------------
    y1_r = y1.reshape(B, C, HW)
    y2_r = y2.reshape(B, C, HW)
    hw_arr = HW
    if HW < _LANE:
        pad = ((0, 0), (0, 0), (0, _LANE - HW))
        y1_r = jnp.pad(y1_r, pad)
        y2_r = jnp.pad(y2_r, pad)
        hw_arr = _LANE

    p = _hw_params()
    block_target = p["block_target"]
    vmem_limit = p["vmem_limit"]
    usable = int(0.7 * (vmem_limit if vmem_limit is not None else 16 * 1024 * 1024))

    # --- batch block: prefer spatial tiles >= 512 lanes (DMA runs >= 2 KiB) --
    b_blk = 1
    for want_tile in (4 * _LANE, _LANE):
        found = False
        for d in range(B, 0, -1):
            if B % d == 0 and d * c_pad * want_tile * dtype_bytes <= block_target:
                b_blk = d
                found = True
                break
        if found:
            break
    n_b = B // b_blk

    # --- spatial tile: VMEM-budgeted (2 inputs x 2 buffers + scratch) -------
    lane_in_bytes = b_blk * c_pad * dtype_bytes                 # one input, one lane
    lane_total = 4 * lane_in_bytes + _round_up(b_blk, 8) * 4    # 2 in x 2 buf + f32 scratch
    tile = max(_LANE, (block_target // lane_in_bytes) // _LANE * _LANE)
    tile = min(tile, max(_LANE, (usable // lane_total) // _LANE * _LANE))
    tile = min(tile, max(_LANE, (hw_arr // _LANE) * _LANE))     # never exceed the array

    n_total = _cdiv(hw_arr, tile)
    splits = min(p["splits"], n_total)
    n_t = _cdiv(n_total, splits)

    # Clamp the block index so a (masked) trailing block never starts past the
    # array end; its contribution is zeroed by the in-kernel mask.
    in_spec = pl.BlockSpec(
        (b_blk, C, tile),
        lambda s, bb, t: (bb, 0, jnp.minimum(s * n_t + t, n_total - 1)))
    out_spec = pl.BlockSpec((1, 1, 1), lambda s, bb, t: (s * n_b + bb, 0, 0))

    partials = pl.pallas_call(
        _make_kernel(n_t, tile, HW),
        out_shape=jax.ShapeDtypeStruct((splits * n_b, 1, 1), jnp.float32),
        grid_spec=pltpu.PrefetchScalarGridSpec(
            num_scalar_prefetch=0,
            grid=(splits, n_b, n_t),
            in_specs=[in_spec, in_spec],
            out_specs=out_spec,
            scratch_shapes=[pltpu.VMEM((b_blk, tile), jnp.float32)],
        ),
        compiler_params=pltpu.CompilerParams(
            # TODO(synk): on v7x, confirm via trace that both TensorCores pick
            # up the leading axis; if not, switch it to pltpu.CORE_PARALLEL.
            dimension_semantics=("parallel", "parallel", "arbitrary"),
            vmem_limit_bytes=vmem_limit,
        ),
    )(y1_r, y2_r)

    # Combine partial sums, mean over the REAL pixels only, then abs.
    return jnp.abs(jnp.sum(partials) / jnp.float32(B * HW))


def _reference(y1, y2):
    # Pure-JAX reference mirroring F.cosine_similarity(dim=1, eps=1e-8).mean().abs()
    y1 = y1.astype(jnp.float32)
    y2 = y2.astype(jnp.float32)
    w12 = jnp.sum(y1 * y2, axis=1)
    w1 = jnp.sum(y1 * y1, axis=1)
    w2 = jnp.sum(y2 * y2, axis=1)
    denom = jnp.maximum(jnp.sqrt(w1), _EPS) * jnp.maximum(jnp.sqrt(w2), _EPS)
    return jnp.abs(jnp.mean(w12 / denom))


if __name__ == "__main__":
    key = jax.random.PRNGKey(0)
    k1, k2, k3, k4, k5, k6, k7, k8 = jax.random.split(key, 8)

    # Case 1: nicely shaped NCHW feature maps (HW multiple of 128, no masking).
    y1 = jax.random.normal(k1, (2, 4, 16, 16), dtype=jnp.float32)
    y2 = jax.random.normal(k2, (2, 4, 16, 16), dtype=jnp.float32)
    loss = jax.block_until_ready(feature_orthogonal_loss(y1, y2))
    ref = _reference(y1, y2)
    assert jnp.allclose(loss, ref, atol=1e-5, rtol=1e-5), (loss, ref)

    # Case 2: tiny awkward shape (HW=63 < 128) exercising the minimal-pad path.
    a1 = jax.random.normal(k3, (2, 3, 7, 9), dtype=jnp.float32)
    a2 = jax.random.normal(k4, (2, 3, 7, 9), dtype=jnp.float32)
    loss2 = jax.block_until_ready(feature_orthogonal_loss(a1, a2))
    ref2 = _reference(a1, a2)
    assert jnp.allclose(loss2, ref2, atol=1e-5, rtol=1e-5), (loss2, ref2)

    # Case 3: HW=153 (>=128, not a multiple of 128) exercising the in-kernel
    # ragged-tail mask with NO wrapper-side padding.
    b1 = jax.random.normal(k5, (2, 4, 9, 17), dtype=jnp.float32)
    b2 = jax.random.normal(k6, (2, 4, 9, 17), dtype=jnp.float32)
    loss3 = jax.block_until_ready(feature_orthogonal_loss(b1, b2))
    ref3 = _reference(b1, b2)
    assert jnp.allclose(loss3, ref3, atol=1e-5, rtol=1e-5), (loss3, ref3)

    # Case 4: bf16 inputs (native-dtype products, f32 accumulation).
    c1 = jax.random.normal(k7, (2, 8, 16, 16), dtype=jnp.bfloat16)
    c2 = jax.random.normal(k8, (2, 8, 16, 16), dtype=jnp.bfloat16)
    loss4 = jax.block_until_ready(feature_orthogonal_loss(c1, c2))
    ref4 = _reference(c1, c2)
    assert jnp.allclose(loss4, ref4, atol=3e-2, rtol=3e-2), (loss4, ref4)

    print("KERNEL_OK")
</pallas_src>

<mosaic_0001>
module attributes {stable_mosaic.version = 11 : i64} {
  func.func @kernel(%arg0: i32, %arg1: i32, %arg2: i32, %arg3: memref<2x4x256xf32, #tpu.memory_space<vmem>>, %arg4: memref<2x4x256xf32, #tpu.memory_space<vmem>>, %arg5: memref<1x1x1xf32, #tpu.memory_space<vmem>>, %arg6: memref<2x256xf32, #tpu.memory_space<vmem>>) attributes {dimension_semantics = [#tpu.dimension_semantics<parallel>, #tpu.dimension_semantics<parallel>, #tpu.dimension_semantics<arbitrary>], iteration_bounds = array<i64: 1, 1, 1>, scalar_prefetch = 0 : i64, scratch_operands = 1 : i64, tpu.core_type = #tpu.core_type<tc>, window_params = [{transform_indices = @transform_0, window_bounds = array<i64: 2, 4, 256>}, {transform_indices = @transform_1, window_bounds = array<i64: 2, 4, 256>}, {transform_indices = @transform_2, window_bounds = array<i64: 1, 1, 1>}]} {
    %c0_i32 = arith.constant 0 : i32
    %0 = arith.cmpi eq, %arg2, %c0_i32 : i32
    %1 = arith.extui %0 : i1 to i32
    %c0_i32_0 = arith.constant 0 : i32
    %2 = arith.cmpi ne, %1, %c0_i32_0 : i32
    scf.if %2 {
      %cst_18 = arith.constant 0.000000e+00 : f32
      %35 = vector.broadcast %cst_18 : f32 to vector<2x256xf32>
      %c0_19 = arith.constant 0 : index
      %c0_20 = arith.constant 0 : index
      %36 = vector.load %arg6[%c0_19, %c0_20] : memref<2x256xf32, #tpu.memory_space<vmem>>, vector<2x256xf32>
      tpu.vector_store %arg6[%c0_19, %c0_20], %35 {strides = array<i32>} : memref<2x256xf32, #tpu.memory_space<vmem>>, vector<2x256xf32>,
    } else {
    }
    %c0 = arith.constant 0 : index
    %c0_1 = arith.constant 0 : index
    %c0_2 = arith.constant 0 : index
    %3 = vector.load %arg3[%c0, %c0_1, %c0_2] : memref<2x4x256xf32, #tpu.memory_space<vmem>>, vector<2x4x256xf32>
    %c0_3 = arith.constant 0 : index
    %c0_4 = arith.constant 0 : index
    %c0_5 = arith.constant 0 : index
    %4 = vector.load %arg4[%c0_3, %c0_4, %c0_5] : memref<2x4x256xf32, #tpu.memory_space<vmem>>, vector<2x4x256xf32>
    %5 = arith.mulf %3, %4 : vector<2x4x256xf32>
    %cst = arith.constant dense<0.000000e+00> : vector<2x256xf32>
    %6 = vector.multi_reduction <add>, %5, %cst [1] : vector<2x4x256xf32> to vector<2x256xf32>
    %7 = arith.mulf %3, %3 : vector<2x4x256xf32>
    %cst_6 = arith.constant dense<0.000000e+00> : vector<2x256xf32>
    %8 = vector.multi_reduction <add>, %7, %cst_6 [1] : vector<2x4x256xf32> to vector<2x256xf32>
    %9 = arith.mulf %4, %4 : vector<2x4x256xf32>
    %cst_7 = arith.constant dense<0.000000e+00> : vector<2x256xf32>
    %10 = vector.multi_reduction <add>, %9, %cst_7 [1] : vector<2x4x256xf32> to vector<2x256xf32>
    %cst_8 = arith.constant 1.000000e-16 : f32
    %11 = vector.broadcast %cst_8 : f32 to vector<2x256xf32>
    %12 = arith.maximumf %8, %11 : vector<2x256xf32>
    %13 = math.rsqrt %12 : vector<2x256xf32>
    %cst_9 = arith.constant 1.000000e-16 : f32
    %14 = vector.broadcast %cst_9 : f32 to vector<2x256xf32>
    %15 = arith.maximumf %10, %14 : vector<2x256xf32>
    %16 = math.rsqrt %15 : vector<2x256xf32>
    %17 = arith.mulf %6, %13 : vector<2x256xf32>
    %18 = arith.mulf %17, %16 : vector<2x256xf32>
    %c1_i32 = arith.constant 1 : i32
    %19 = arith.muli %arg0, %c1_i32 : i32
    %20 = arith.addi %19, %arg2 : i32
    %c256_i32 = arith.constant 256 : i32
    %21 = arith.muli %20, %c256_i32 : i32
    %22 = tpu.iota {dimensions = array<i32: 1>} : vector<2x256xi32>
    %23 = vector.broadcast %21 : i32 to vector<2x256xi32>
    %24 = arith.addi %22, %23 : vector<2x256xi32>
    %c256_i32_10 = arith.constant 256 : i32
    %25 = vector.broadcast %c256_i32_10 : i32 to vector<2x256xi32>
    %26 = arith.cmpi slt, %24, %25 : vector<2x256xi32>
    %cst_11 = arith.constant 0.000000e+00 : f32
    %27 = vector.broadcast %cst_11 : f32 to vector<2x256xf32>
    %28 = arith.select %26, %18, %27 : vector<2x256xi1>, vector<2x256xf32>
    %c0_12 = arith.constant 0 : index
    %c0_13 = arith.constant 0 : index
    %29 = vector.load %arg6[%c0_12, %c0_13] : memref<2x256xf32, #tpu.memory_space<vmem>>, vector<2x256xf32>
    %30 = arith.addf %29, %28 : vector<2x256xf32>
    %c0_14 = arith.constant 0 : index
    %c0_15 = arith.constant 0 : index
    %31 = vector.load %arg6[%c0_14, %c0_15] : memref<2x256xf32, #tpu.memory_space<vmem>>, vector<2x256xf32>
    tpu.vector_store %arg6[%c0_14, %c0_15], %30 {strides = array<i32>} : memref<2x256xf32, #tpu.memory_space<vmem>>, vector<2x256xf32>,
    %c0_i32_16 = arith.constant 0 : i32
    %32 = arith.cmpi eq, %arg2, %c0_i32_16 : i32
    %33 = arith.extui %32 : i1 to i32
    %c0_i32_17 = arith.constant 0 : i32
    %34 = arith.cmpi ne, %33, %c0_i32_17 : i32
    scf.if %34 {
      %c0_18 = arith.constant 0 : index
      %c0_19 = arith.constant 0 : index
      %35 = vector.load %arg6[%c0_18, %c0_19] : memref<2x256xf32, #tpu.memory_space<vmem>>, vector<2x256xf32>
      %36 = vector.shape_cast %35 : vector<2x256xf32> to vector<1x2x256xf32>
      %cst_20 = arith.constant dense<0.000000e+00> : vector<1xf32>
      %37 = vector.multi_reduction <add>, %36, %cst_20 [1, 2] : vector<1x2x256xf32> to vector<1xf32>
      %38 = vector.shape_cast %37 : vector<1xf32> to vector<1x1x1xf32>
      %39 = vector.extract %38[0, 0, 0] : f32 from vector<1x1x1xf32>
      %40 = vector.broadcast %39 : f32 to vector<1x1xf32>
      %41 = vector.shape_cast %40 : vector<1x1xf32> to vector<1x1x1xf32>
      %c0_21 = arith.constant 0 : index
      %c0_22 = arith.constant 0 : index
      %c0_23 = arith.constant 0 : index
      %42 = vector.load %arg5[%c0_21, %c0_22, %c0_23] : memref<1x1x1xf32, #tpu.memory_space<vmem>>, vector<1x1x1xf32>
      tpu.vector_store %arg5[%c0_21, %c0_22, %c0_23], %41 {strides = array<i32>} : memref<1x1x1xf32, #tpu.memory_space<vmem>>, vector<1x1x1xf32>,
    } else {
    }
    return
  }
  func.func @transform_0(%arg0: i32, %arg1: i32, %arg2: i32) -> (i32, i32, i32) {
    %c1_i32 = arith.constant 1 : i32
    %0 = arith.muli %arg0, %c1_i32 : i32
    %1 = arith.addi %0, %arg2 : i32
    %c0_i32 = arith.constant 0 : i32
    %2 = arith.minsi %1, %c0_i32 : i32
    %c0_i32_0 = arith.constant 0 : i32
    %c0_i32_1 = arith.constant 0 : i32
    return %arg1, %c0_i32_0, %2 : i32, i32, i32
  }
  func.func @transform_1(%arg0: i32, %arg1: i32, %arg2: i32) -> (i32, i32, i32) {
    %c1_i32 = arith.constant 1 : i32
    %0 = arith.muli %arg0, %c1_i32 : i32
    %1 = arith.addi %0, %arg2 : i32
    %c0_i32 = arith.constant 0 : i32
    %2 = arith.minsi %1, %c0_i32 : i32
    %c0_i32_0 = arith.constant 0 : i32
    %c0_i32_1 = arith.constant 0 : i32
    return %arg1, %c0_i32_0, %2 : i32, i32, i32
  }
  func.func @transform_2(%arg0: i32, %arg1: i32, %arg2: i32) -> (i32, i32, i32) {
    %c1_i32 = arith.constant 1 : i32
    %0 = arith.muli %arg0, %c1_i32 : i32
    %1 = arith.addi %0, %arg1 : i32
    %c0_i32 = arith.constant 0 : i32
    %c0_i32_0 = arith.constant 0 : i32
    %c0_i32_1 = arith.constant 0 : i32
    return %1, %c0_i32, %c0_i32_0 : i32, i32, i32
  }
}

</mosaic_0001>

<llo_original>
// kernel: tpu_custom_call.1
$region0: #{tpu_custom_call.1}
  #allocation0 [shape = 'u32[]', space=smem, size = 0x4, offset = 0x4, fixed_abs, tag = 'smem constant byte address 0x4 - core index']
  #allocation1 [shape = 'u32[144,128]{1,0:T(1,128)}', space=vmem, size = 0x12000, scoped, tag = 'internal scratch']
  #allocation2 [shape = 'f32[2,256]{1,0:T(2,128)}', space=vmem, size = 0x800, scoped, tag = 'scratch operand']
  %s0 = inlined_call_operand.hbm [shape: f32[2,4,256], index: 0, kind: input, shape index: {}]
  %s1 = inlined_call_operand.hbm [shape: f32[2,4,256], index: 1, kind: input, shape index: {}]
  %s2 = inlined_call_operand.hbm [shape: f32[1,1,1], index: 2, kind: output, shape index: {}]
  %s3 = sld [smem:[#allocation0]]
  $region34: #{tpu_custom_call.1} parent=0
    _
  %s5 = ssub.s32 1, %s3
  %s6 = scalar_select 0, %s5, %s3
  $region1: #{tpu_custom_call.1} parent=0
    #allocation3 [shape = 'u8[8192]{0}', space=vmem, size = 0x2000, scoped, tag = 'input window, operand 0, single buffered']
    #allocation4 [shape = 's32[1]{0}', space=sflag, size = 0x4, scoped, tag = 'scoped memory for tpu_custom_call.1']
    #allocation5 [shape = 's32[1]{0}', space=sflag, size = 0x4, scoped, tag = 'scoped memory for tpu_custom_call.1']
    #allocation6 [shape = 'u8[8192]{0}', space=vmem, size = 0x2000, scoped, tag = 'input window, operand 1, single buffered']
    #allocation7 [shape = 's32[1]{0}', space=sflag, size = 0x4, scoped, tag = 'scoped memory for tpu_custom_call.1']
    #allocation8 [shape = 'u8[512]{0}', space=vmem, size = 0x400, scoped, tag = 'output window, operand 0, single buffered']
    %7 = vsyncpa [#allocation4], 0
    %8 = vsyncpa [#allocation7], 0
    %9 = vsyncpa [#allocation5], 0
    // Predicated region
    $region2: #{tpu_custom_call.1} parent=1 // pred_check
      _
    $region3: #{tpu_custom_call.1} parent=1 // pred_check_branch
      %11 = sbr.rel (0) target = $region5
    $region4: #{tpu_custom_call.1} parent=1 // pred_region
      %s12 = sadd.s32 0, 0
      %p13 = scmp.lt.s32.totalorder %s12, 0
      %s14 = scalar_select %p13, %s12, 0
      %s15 = smul.u32 2, %s14
      %s17 = ssub.s32 256, 256
      %18 = vsyncadd [#allocation4], %s17
      %s19 = smul.addr %s15, 64
      %s20 = scalar_lea.hbm %s0, %s19
      %s21 = sshll.u32 [#allocation3], 4
      %s22 = int_to_ptr.vmem [resolvable:$true] %s21
      %27 = dma.hbm_to_vmem [thread:$0]  %s20, 256, %s22, [#allocation4], 128, 128, 8
    $region5: #{tpu_custom_call.1} parent=1 // pred_fallthru
      _
    // Predicated region
    $region6: #{tpu_custom_call.1} parent=1 // pred_check
      _
    $region7: #{tpu_custom_call.1} parent=1 // pred_check_branch
      %29 = sbr.rel (0) target = $region9
    $region8: #{tpu_custom_call.1} parent=1 // pred_region
      %s30 = sadd.s32 0, 0
      %p31 = scmp.lt.s32.totalorder %s30, 0
      %s32 = scalar_select %p31, %s30, 0
      %s33 = smul.u32 2, %s32
      %s35 = ssub.s32 256, 256
      %36 = vsyncadd [#allocation7], %s35
      %s37 = smul.addr %s33, 64
      %s38 = scalar_lea.hbm %s1, %s37
      %s39 = sshll.u32 [#allocation6], 4
      %s40 = int_to_ptr.vmem [resolvable:$true] %s39
      %45 = dma.hbm_to_vmem [thread:$0]  %s38, 256, %s40, [#allocation7], 128, 128, 8
    $region9: #{tpu_custom_call.1} parent=1 // pred_fallthru
      _
    // Predicated region
    $region10: #{tpu_custom_call.1} parent=1 // pred_check
      _
    $region11: #{tpu_custom_call.1} parent=1 // pred_check_branch
      %47 = sbr.rel (0) target = $region13
    $region12: #{tpu_custom_call.1} parent=1 // pred_region
      %48 = dma.done [#allocation4], 256
    $region13: #{tpu_custom_call.1} parent=1 // pred_fallthru
      _
    // Predicated region
    $region14: #{tpu_custom_call.1} parent=1 // pred_check
      _
    $region15: #{tpu_custom_call.1} parent=1 // pred_check_branch
      %50 = sbr.rel (0) target = $region17
    $region16: #{tpu_custom_call.1} parent=1 // pred_region
      %51 = dma.done [#allocation7], 256
    $region17: #{tpu_custom_call.1} parent=1 // pred_fallthru
      _
    %s52 = sadd.s32 0, 0
    %p53 = scmp.lt.s32.totalorder %s52, 0
    %s54 = scalar_select %p53, %s52, 0
    %s55 = smul.u32 2, %s54
    %s56 = sadd.s32 0, 0
    %p57 = scmp.lt.s32.totalorder %s56, 0
    %s58 = scalar_select %p57, %s56, 0
    %s59 = smul.u32 2, %s58
    %s60 = sadd.s32 0, 0
    %p61 = scmp.eq.s32.totalorder 0, 0
    // Predicated region
    $region18: #{tpu_custom_call.1} parent=1 // pred_check
      %p62 = pneg %p61
    $region19: #{tpu_custom_call.1} parent=1 // pred_check_branch
      %64 = sbr.rel (%p62) target = $region21
    $region20: #{tpu_custom_call.1} parent=1 // pred_region
      %65 = vst [vmem:[#allocation2] sm:$0xf] 0.0
    $region21: #{tpu_custom_call.1} parent=1 // pred_fallthru
      _
    %v66 = vld [vmem:[#allocation3] sm:$0xff]
    %v67 = vld [vmem:[#allocation3 + $0x8] sm:$0xff]
    %v68 = vld [vmem:[#allocation6] sm:$0xff]
    %v69 = vld [vmem:[#allocation6 + $0x8] sm:$0xff]
    %v70 = vmul.f32 %v66, %v68
    %v71 = vmul.f32 %v67, %v69
    %v74 = vcombine.high %v70, %v70
    %v75 = vcombine.high %v71, %v71
    %vm78 = vcmask 1043456
    %v79 = vsel %vm78, %v70, 0.0
    %v80 = vrot.slane %v79, 4
    %v81 = vadd.f32 %v79, %v80
    %v82 = vrot.slane %v81, 2
    %v83 = vadd.f32 %v81, %v82
    %v84 = vrot.slane %v83, 1
    %v85 = vadd.f32 %v83, %v84
    %v86 = vsel %vm78, %v74, 0.0
    %v87 = vrot.slane %v86, 4
    %v88 = vadd.f32 %v86, %v87
    %v89 = vrot.slane %v88, 2
    %v90 = vadd.f32 %v88, %v89
    %v91 = vrot.slane %v90, 1
    %v92 = vadd.f32 %v90, %v91
    %v93 = vsel %vm78, %v71, 0.0
    %v94 = vrot.slane %v93, 4
    %v95 = vadd.f32 %v93, %v94
    %v96 = vrot.slane %v95, 2
    %v97 = vadd.f32 %v95, %v96
    %v98 = vrot.slane %v97, 1
    %v99 = vadd.f32 %v97, %v98
    %v100 = vsel %vm78, %v75, 0.0
    %v101 = vrot.slane %v100, 4
    %v102 = vadd.f32 %v100, %v101
    %v103 = vrot.slane %v102, 2
    %v104 = vadd.f32 %v102, %v103
    %v105 = vrot.slane %v104, 1
    %v106 = vadd.f32 %v104, %v105
    %v107 = vmul.f32 %v66, %v66
    %v108 = vmul.f32 %v67, %v67
    %v111 = vcombine.high %v107, %v107
    %v112 = vcombine.high %v108, %v108
    %v115 = vsel %vm78, %v107, 0.0
    %v116 = vrot.slane %v115, 4
    %v117 = vadd.f32 %v115, %v116
    %v118 = vrot.slane %v117, 2
    %v119 = vadd.f32 %v117, %v118
    %v120 = vrot.slane %v119, 1
    %v121 = vadd.f32 %v119, %v120
    %v122 = vsel %vm78, %v111, 0.0
    %v123 = vrot.slane %v122, 4
    %v124 = vadd.f32 %v122, %v123
    %v125 = vrot.slane %v124, 2
    %v126 = vadd.f32 %v124, %v125
    %v127 = vrot.slane %v126, 1
    %v128 = vadd.f32 %v126, %v127
    %v129 = vsel %vm78, %v108, 0.0
    %v130 = vrot.slane %v129, 4
    %v131 = vadd.f32 %v129, %v130
    %v132 = vrot.slane %v131, 2
    %v133 = vadd.f32 %v131, %v132
    %v134 = vrot.slane %v133, 1
    %v135 = vadd.f32 %v133, %v134
    %v136 = vsel %vm78, %v112, 0.0
    %v137 = vrot.slane %v136, 4
    %v138 = vadd.f32 %v136, %v137
    %v139 = vrot.slane %v138, 2
    %v140 = vadd.f32 %v138, %v139
    %v141 = vrot.slane %v140, 1
    %v142 = vadd.f32 %v140, %v141
    %v143 = vmul.f32 %v68, %v68
    %v144 = vmul.f32 %v69, %v69
    %v147 = vcombine.high %v143, %v143
    %v148 = vcombine.high %v144, %v144
    %v151 = vsel %vm78, %v143, 0.0
    %v152 = vrot.slane %v151, 4
    %v153 = vadd.f32 %v151, %v152
    %v154 = vrot.slane %v153, 2
    %v155 = vadd.f32 %v153, %v154
    %v156 = vrot.slane %v155, 1
    %v157 = vadd.f32 %v155, %v156
    %v158 = vsel %vm78, %v147, 0.0
    %v159 = vrot.slane %v158, 4
    %v160 = vadd.f32 %v158, %v159
    %v161 = vrot.slane %v160, 2
    %v162 = vadd.f32 %v160, %v161
    %v163 = vrot.slane %v162, 1
    %v164 = vadd.f32 %v162, %v163
    %v165 = vsel %vm78, %v144, 0.0
    %v166 = vrot.slane %v165, 4
    %v167 = vadd.f32 %v165, %v166
    %v168 = vrot.slane %v167, 2
    %v169 = vadd.f32 %v167, %v168
    %v170 = vrot.slane %v169, 1
    %v171 = vadd.f32 %v169, %v170
    %v172 = vsel %vm78, %v148, 0.0
    %v173 = vrot.slane %v172, 4
    %v174 = vadd.f32 %v172, %v173
    %v175 = vrot.slane %v174, 2
    %v176 = vadd.f32 %v174, %v175
    %v177 = vrot.slane %v176, 1
    %v178 = vadd.f32 %v176, %v177
    %v179 = vmax.f32 %v121, 1e-16
    %v180 = vmax.f32 %v128, 1e-16
    %v181 = vmax.f32 %v135, 1e-16
    %v182 = vmax.f32 %v142, 1e-16
    %v183 = vrsqrt.pop %v179
    %v184 = vrsqrt.pop %v180
    %v185 = vrsqrt.pop %v181
    %v186 = vrsqrt.pop %v182
    %v187 = vmax.f32 %v157, 1e-16
    %v188 = vmax.f32 %v164, 1e-16
    %v189 = vmax.f32 %v171, 1e-16
    %v190 = vmax.f32 %v178, 1e-16
    %v191 = vrsqrt.pop %v187
    %v192 = vrsqrt.pop %v188
    %v193 = vrsqrt.pop %v189
    %v194 = vrsqrt.pop %v190
    %v195 = vmul.f32 %v85, %v183
    %v196 = vmul.f32 %v92, %v184
    %v197 = vmul.f32 %v99, %v185
    %v198 = vmul.f32 %v106, %v186
    %v199 = vmul.f32 %v195, %v191
    %v200 = vmul.f32 %v196, %v192
    %v201 = vmul.f32 %v197, %v193
    %v202 = vmul.f32 %v198, %v194
    %s203 = sadd.s32 0, 0
    %s204 = smul.u32 %s203, 256
    %v205 = vlaneseq
    %v206 = vand.u32 %v205, 127
    %v207 = vadd.s32 %v206, 128
    %v208 = vstv %s204
    %v209 = vadd.s32 %v206, %v208
    %v210 = vadd.s32 %v207, %v208
    %vm211 = vcmp.lt.s32.totalorder %v209, 256
    %vm212 = vcmp.lt.s32.totalorder %v210, 256
    %vm217 = vcmask 1041409
    %v218 = vsel %vm217, %v201, %v199
    %v219 = vsel %vm217, %v202, %v200
    %v222 = vsel %vm211, %v218, 0.0
    %v223 = vsel %vm212, %v219, 0.0
    %v224 = vld [vmem:[#allocation2] sm:$0xf]
    %v227 = vcombine.low %v222, %v223
    %v229 = vunpack.c.l.s4 1983009808
    %v230 = vunpack.c.0.s8 %v229
    %v231 = vlaneseq
    %v232 = vshrl.u32 %v231, 7
    %v233 = vsub.s32 %v230, %v232
    %v234 = vrot.slane %v227, %v233
    %v236 = vadd.f32 %v224, %v234
    %237 = vst [vmem:[#allocation2] sm:$0xf] %v236
    // Predicated region
    $region22: #{tpu_custom_call.1} parent=1 // pred_check
      %p238 = pneg %p61
    $region23: #{tpu_custom_call.1} parent=1 // pred_check_branch
      %240 = sbr.rel (%p238) target = $region25
    $region24: #{tpu_custom_call.1} parent=1 // pred_region
      %v241 = vld [vmem:[#allocation2] sm:$0xf]
      %v244 = vunpack.c.l.s4 1983009808
      %v245 = vunpack.c.0.s8 %v244
      %v246 = vlaneseq
      %v247 = vshrl.u32 %v246, 7
      %v248 = vsub.s32 %v245, %v247
      %v249 = vrot.slane %v241, %v248
      %v250 = vcombine.high %v249, %v249
      %vm253 = vcmask 1041408
      %v254 = vsel %vm253, %v249, 0.0
      %v255 = vsel %vm253, %v250, 0.0
      %v256 = vadd.f32 %v254, %v255
      %257 = vadd.xlane.f32.xlu0 %v256
      %v258 = vpop.xlane.xlu0 %257
      %v259 = vrot.slane %v258, 4
      %v260 = vadd.f32 %v258, %v259
      %v261 = vrot.slane %v260, 2
      %v262 = vadd.f32 %v260, %v261
      %v263 = vrot.slane %v262, 1
      %v264 = vadd.f32 %v262, %v263
      %s265 = vtos %v264
      %v266 = vstv %s265
      %vm267 = vcmask 0
      %268 = vst.msk [vmem:[#allocation8] sm:$0x1] %vm267, %v266
    $region25: #{tpu_custom_call.1} parent=1 // pred_fallthru
      _
    // Predicated region
    $region26: #{tpu_custom_call.1} parent=1 // pred_check
      _
    $region27: #{tpu_custom_call.1} parent=1 // pred_check_branch
      %270 = sbr.rel (0) target = $region29
    $region28: #{tpu_custom_call.1} parent=1 // pred_region
      %s271 = sadd.s32 0, 0
      %s273 = ssub.s32 16, 16
      %274 = vsyncadd [#allocation5], %s273
      %s275 = smul.addr %s271, 16
      %s276 = scalar_lea.hbm %s2, %s275
      %s278 = sshll.u32 [#allocation8], 4
      %s279 = int_to_ptr.vmem [resolvable:$true] %s278
      %281 = dma.vmem_to_hbm [thread:$0]  %s279, 16, %s276, [#allocation5]
    $region29: #{tpu_custom_call.1} parent=1 // pred_fallthru
      _
    // Predicated region
    $region30: #{tpu_custom_call.1} parent=1 // pred_check
      _
    $region31: #{tpu_custom_call.1} parent=1 // pred_check_branch
      %283 = sbr.rel (0) target = $region33
    $region32: #{tpu_custom_call.1} parent=1 // pred_region
      %284 = dma.done [#allocation5], 16
    $region33: #{tpu_custom_call.1} parent=1 // pred_fallthru
      _
    %285 = vsyncpa [#allocation4], 1
    %286 = vsyncpa [#allocation7], 1
    %287 = vsyncpa [#allocation5], 1

</llo_original>
